<compile_context>
chip_gen: v5e
topology: v5e:2x2
jax: 0.10.0
libtpu: 0.0.40
codegen_flags: <defaults>
</compile_context>

<pallas_src>
import functools

import jax
import jax.numpy as jnp
from jax.experimental import pallas as pl
from jax.experimental.pallas import tpu as pltpu


def _attention_kernel(x_ref, gamma_ref, beta_ref, wqkv_ref, wout_ref, bout_ref,
                      o_ref, *, batch, seq, heads, dim_head, scale):
    bn, dim = x_ref.shape                      # (b*n, dim) token matrix
    inner = heads * dim_head

    x = x_ref[...].astype(jnp.float32)

    # ---- LayerNorm(dim), eps = 1e-5, biased variance (PyTorch semantics) ----
    mu = jnp.mean(x, axis=-1, keepdims=True)
    xc = x - mu
    var = jnp.mean(xc * xc, axis=-1, keepdims=True)
    xn = xc * jax.lax.rsqrt(var + 1e-5)
    xn = xn * gamma_ref[...] + beta_ref[...]                    # (b*n, dim)

    # ---- QKV projection: one MXU matmul for all tokens and heads (no bias) ----
    qkv = jnp.dot(xn, wqkv_ref[...],
                  preferred_element_type=jnp.float32)           # (b*n, 3*inner)

    # Fold the softmax scale into Q once (single VPU mul over one vreg).
    q_all = qkv[:, :inner] * scale
    k_all = qkv[:, inner:2 * inner]
    v_all = qkv[:, 2 * inner:]

    # ---- per-head attention, batched over `b`; output projection is
    #      accumulated per head against sublane row-slices of W_out, so no
    #      lane-axis concatenate is needed. ----
    y = jnp.zeros((bn, dim), dtype=jnp.float32)
    for h in range(heads):                                       # static unroll
        sl = slice(h * dim_head, (h + 1) * dim_head)
        q = q_all[:, sl].reshape(batch, seq, dim_head)
        k = k_all[:, sl].reshape(batch, seq, dim_head)
        v = v_all[:, sl].reshape(batch, seq, dim_head)

        dots = jnp.einsum('bnd,bmd->bnm', q, k,
                          preferred_element_type=jnp.float32)    # (b, n, n)
        m = jnp.max(dots, axis=-1, keepdims=True)
        p = jnp.exp(dots - m)
        attn = p * pl.reciprocal(jnp.sum(p, axis=-1, keepdims=True), approx=True)
        # dropout(p=0.0) is the identity
        out_h = jnp.einsum('bnm,bmd->bnd', attn, v,
                           preferred_element_type=jnp.float32)   # (b, n, d)

        # W_out row-slice along sublanes: static, zero-cost ref view.
        y = y + jnp.dot(out_h.reshape(bn, dim_head), wout_ref[sl, :],
                        preferred_element_type=jnp.float32)      # (b*n, dim)

    o_ref[...] = (y + bout_ref[...]).astype(o_ref.dtype)


def attention_pallas(x, gamma, beta, w_qkv, w_out, b_out, *, heads, dim_head):
    b, n, dim = x.shape
    scale = dim_head ** -0.5

    kernel = functools.partial(_attention_kernel, batch=b, seq=n,
                               heads=heads, dim_head=dim_head, scale=scale)

    # Flatten tokens outside the kernel: (b, n, dim) -> (b*n, dim) is a free
    # leading-dim merge. Single invocation; every operand is a whole-array
    # VMEM block.
    x2 = x.reshape(b * n, dim)
    y_flat = pl.pallas_call(
        kernel,
        out_shape=jax.ShapeDtypeStruct((b * n, dim), x.dtype),
        in_specs=[pl.BlockSpec(memory_space=pltpu.MemorySpace.VMEM)] * 6,
        out_specs=pl.BlockSpec(memory_space=pltpu.MemorySpace.VMEM),
    )(x2, gamma, beta, w_qkv, w_out, b_out)

    return y_flat.reshape(b, n, dim)


def attention_reference(x, gamma, beta, w_qkv, w_out, b_out, *, heads, dim_head):
    """Pure-JAX reference mirroring the PyTorch forward."""
    inner = heads * dim_head
    scale = dim_head ** -0.5
    mu = jnp.mean(x, axis=-1, keepdims=True)
    var = jnp.mean((x - mu) ** 2, axis=-1, keepdims=True)
    xn = (x - mu) / jnp.sqrt(var + 1e-5) * gamma[0] + beta[0]
    qkv = xn @ w_qkv                                            # (b, n, 3*inner)
    q, k, v = jnp.split(qkv, 3, axis=-1)

    def to_heads(t):
        bb, nn, _ = t.shape
        return t.reshape(bb, nn, heads, dim_head).transpose(0, 2, 1, 3)

    q, k, v = map(to_heads, (q, k, v))
    dots = jnp.einsum('bhnd,bhmd->bhnm', q, k) * scale
    attn = jax.nn.softmax(dots, axis=-1)
    out = jnp.einsum('bhnm,bhmd->bhnd', attn, v)
    out = out.transpose(0, 2, 1, 3).reshape(x.shape[0], x.shape[1], inner)
    return out @ w_out + b_out[0]


if __name__ == "__main__":
    # Module hyper-params (small, consistent with the nn.Module __init__)
    batch, seq, dim = 2, 8, 32
    heads, dim_head = 4, 16
    inner = heads * dim_head

    key = jax.random.PRNGKey(0)
    kx, kg, kb, kqkv, kwo, kbo = jax.random.split(key, 6)

    x = jax.random.normal(kx, (batch, seq, dim), dtype=jnp.float32)

    # Deterministic synthetic parameters
    gamma = 1.0 + 0.1 * jax.random.normal(kg, (1, dim), dtype=jnp.float32)
    beta = 0.1 * jax.random.normal(kb, (1, dim), dtype=jnp.float32)
    w_qkv = 0.05 * jax.random.normal(kqkv, (dim, 3 * inner), dtype=jnp.float32)
    w_out = 0.05 * jax.random.normal(kwo, (inner, dim), dtype=jnp.float32)
    b_out = 0.05 * jax.random.normal(kbo, (1, dim), dtype=jnp.float32)

    y = attention_pallas(x, gamma, beta, w_qkv, w_out, b_out,
                         heads=heads, dim_head=dim_head)
    y = jax.block_until_ready(y)

    y_ref = attention_reference(x, gamma, beta, w_qkv, w_out, b_out,
                                heads=heads, dim_head=dim_head)
    assert y.shape == (batch, seq, dim)
    # approx=True reciprocal in the softmax -> allow a slightly looser tolerance
    max_err = float(jnp.max(jnp.abs(y - y_ref)))
    assert max_err < 1e-3, f"mismatch vs reference (max abs err {max_err})"

    print("KERNEL_OK")
</pallas_src>

<mosaic_0001>
module attributes {stable_mosaic.version = 11 : i64} {
  func.func @_attention_kernel(%arg0: memref<16x32xf32, #tpu.memory_space<vmem>>, %arg1: memref<1x32xf32, #tpu.memory_space<vmem>>, %arg2: memref<1x32xf32, #tpu.memory_space<vmem>>, %arg3: memref<32x192xf32, #tpu.memory_space<vmem>>, %arg4: memref<64x32xf32, #tpu.memory_space<vmem>>, %arg5: memref<1x32xf32, #tpu.memory_space<vmem>>, %arg6: memref<16x32xf32, #tpu.memory_space<vmem>>) attributes {dimension_semantics = [], scalar_prefetch = 0 : i64, scratch_operands = 0 : i64, tpu.core_type = #tpu.core_type<tc>} {
    %c0 = arith.constant 0 : index
    %c0_0 = arith.constant 0 : index
    %0 = vector.load %arg0[%c0, %c0_0] : memref<16x32xf32, #tpu.memory_space<vmem>>, vector<16x32xf32>
    %cst = arith.constant dense<0.000000e+00> : vector<16xf32>
    %1 = vector.multi_reduction <add>, %0, %cst [1] : vector<16x32xf32> to vector<16xf32>
    %2 = vector.shape_cast %1 : vector<16xf32> to vector<16x1xf32>
    %cst_1 = arith.constant 3.200000e+01 : f32
    %3 = vector.broadcast %cst_1 : f32 to vector<16x1xf32>
    %4 = arith.divf %2, %3 : vector<16x1xf32>
    %5 = vector.broadcast %4 : vector<16x1xf32> to vector<16x32xf32>
    %6 = arith.subf %0, %5 : vector<16x32xf32>
    %7 = arith.mulf %6, %6 : vector<16x32xf32>
    %cst_2 = arith.constant dense<0.000000e+00> : vector<16xf32>
    %8 = vector.multi_reduction <add>, %7, %cst_2 [1] : vector<16x32xf32> to vector<16xf32>
    %9 = vector.shape_cast %8 : vector<16xf32> to vector<16x1xf32>
    %cst_3 = arith.constant 3.200000e+01 : f32
    %10 = vector.broadcast %cst_3 : f32 to vector<16x1xf32>
    %11 = arith.divf %9, %10 : vector<16x1xf32>
    %cst_4 = arith.constant 9.99999974E-6 : f32
    %12 = vector.broadcast %cst_4 : f32 to vector<16x1xf32>
    %13 = arith.addf %11, %12 : vector<16x1xf32>
    %14 = math.rsqrt %13 : vector<16x1xf32>
    %15 = vector.broadcast %14 : vector<16x1xf32> to vector<16x32xf32>
    %16 = arith.mulf %6, %15 : vector<16x32xf32>
    %c0_5 = arith.constant 0 : index
    %c0_6 = arith.constant 0 : index
    %17 = vector.load %arg1[%c0_5, %c0_6] : memref<1x32xf32, #tpu.memory_space<vmem>>, vector<1x32xf32>
    %18 = vector.broadcast %17 : vector<1x32xf32> to vector<16x32xf32>
    %19 = arith.mulf %16, %18 : vector<16x32xf32>
    %c0_7 = arith.constant 0 : index
    %c0_8 = arith.constant 0 : index
    %20 = vector.load %arg2[%c0_7, %c0_8] : memref<1x32xf32, #tpu.memory_space<vmem>>, vector<1x32xf32>
    %21 = vector.broadcast %20 : vector<1x32xf32> to vector<16x32xf32>
    %22 = arith.addf %19, %21 : vector<16x32xf32>
    %c0_9 = arith.constant 0 : index
    %c0_10 = arith.constant 0 : index
    %23 = vector.load %arg3[%c0_9, %c0_10] : memref<32x192xf32, #tpu.memory_space<vmem>>, vector<32x192xf32>
    %cst_11 = arith.constant dense<0.000000e+00> : vector<16x192xf32>
    %24 = tpu.matmul %22, %23, %cst_11 {dimension_numbers = #tpu.dot_dimension_numbers<[1], [0], [0], [1], [0, 0, 1, 1], [], []>} : vector<16x32xf32>, vector<32x192xf32>, vector<16x192xf32> -> vector<16x192xf32>
    %25 = vector.extract_strided_slice %24 {offsets = [0, 0], sizes = [16, 64], strides = [1, 1]} : vector<16x192xf32> to vector<16x64xf32>
    %cst_12 = arith.constant 2.500000e-01 : f32
    %26 = vector.broadcast %cst_12 : f32 to vector<16x64xf32>
    %27 = arith.mulf %25, %26 : vector<16x64xf32>
    %28 = vector.extract_strided_slice %24 {offsets = [0, 64], sizes = [16, 64], strides = [1, 1]} : vector<16x192xf32> to vector<16x64xf32>
    %29 = vector.extract_strided_slice %24 {offsets = [0, 128], sizes = [16, 64], strides = [1, 1]} : vector<16x192xf32> to vector<16x64xf32>
    %cst_13 = arith.constant 0.000000e+00 : f32
    %30 = vector.broadcast %cst_13 : f32 to vector<16x32xf32>
    %31 = vector.extract_strided_slice %27 {offsets = [0, 0], sizes = [16, 16], strides = [1, 1]} : vector<16x64xf32> to vector<16x16xf32>
    %32 = vector.shape_cast %31 : vector<16x16xf32> to vector<2x8x16xf32>
    %33 = vector.extract_strided_slice %28 {offsets = [0, 0], sizes = [16, 16], strides = [1, 1]} : vector<16x64xf32> to vector<16x16xf32>
    %34 = vector.shape_cast %33 : vector<16x16xf32> to vector<2x8x16xf32>
    %35 = vector.extract_strided_slice %29 {offsets = [0, 0], sizes = [16, 16], strides = [1, 1]} : vector<16x64xf32> to vector<16x16xf32>
    %36 = vector.shape_cast %35 : vector<16x16xf32> to vector<2x8x16xf32>
    "tpu.trace_start"() <{level = 10 : i32, message = "bnd,bmd->bnm"}> : () -> ()
    %cst_14 = arith.constant dense<0.000000e+00> : vector<2x8x8xf32>
    %37 = tpu.matmul %32, %34, %cst_14 {dimension_numbers = #tpu.dot_dimension_numbers<[2], [2], [1], [1], [0, 0, 0, 1, 1, 1], [0], [0]>} : vector<2x8x16xf32>, vector<2x8x16xf32>, vector<2x8x8xf32> -> vector<2x8x8xf32>
    "tpu.trace_stop"() : () -> ()
    %cst_15 = arith.constant dense<0xFF800000> : vector<2x8xf32>
    %38 = vector.multi_reduction <maximumf>, %37, %cst_15 [2] : vector<2x8x8xf32> to vector<2x8xf32>
    %39 = vector.shape_cast %38 : vector<2x8xf32> to vector<2x8x1xf32>
    %40 = vector.broadcast %39 : vector<2x8x1xf32> to vector<2x8x8xf32>
    %41 = arith.subf %37, %40 : vector<2x8x8xf32>
    %42 = math.exp %41 : vector<2x8x8xf32>
    %cst_16 = arith.constant dense<0.000000e+00> : vector<2x8xf32>
    %43 = vector.multi_reduction <add>, %42, %cst_16 [2] : vector<2x8x8xf32> to vector<2x8xf32>
    %44 = vector.shape_cast %43 : vector<2x8xf32> to vector<2x8x1xf32>
    %45 = tpu.reciprocal %44 {approx = true} : vector<2x8x1xf32> -> vector<2x8x1xf32>
    %46 = vector.broadcast %45 : vector<2x8x1xf32> to vector<2x8x8xf32>
    %47 = arith.mulf %42, %46 : vector<2x8x8xf32>
    "tpu.trace_start"() <{level = 10 : i32, message = "bnm,bmd->bnd"}> : () -> ()
    %cst_17 = arith.constant dense<0.000000e+00> : vector<2x8x16xf32>
    %48 = tpu.matmul %47, %36, %cst_17 {dimension_numbers = #tpu.dot_dimension_numbers<[2], [1], [1], [2], [0, 0, 0, 1, 1, 2], [0], [0]>} : vector<2x8x8xf32>, vector<2x8x16xf32>, vector<2x8x16xf32> -> vector<2x8x16xf32>
    "tpu.trace_stop"() : () -> ()
    %49 = vector.shape_cast %48 : vector<2x8x16xf32> to vector<16x16xf32>
    %c0_18 = arith.constant 0 : index
    %c0_19 = arith.constant 0 : index
    %50 = vector.load %arg4[%c0_18, %c0_19] : memref<64x32xf32, #tpu.memory_space<vmem>>, vector<16x32xf32>
    %cst_20 = arith.constant dense<0.000000e+00> : vector<16x32xf32>
    %51 = tpu.matmul %49, %50, %cst_20 {dimension_numbers = #tpu.dot_dimension_numbers<[1], [0], [0], [1], [0, 0, 1, 1], [], []>} : vector<16x16xf32>, vector<16x32xf32>, vector<16x32xf32> -> vector<16x32xf32>
    %52 = arith.addf %30, %51 : vector<16x32xf32>
    %53 = vector.extract_strided_slice %27 {offsets = [0, 16], sizes = [16, 16], strides = [1, 1]} : vector<16x64xf32> to vector<16x16xf32>
    %54 = vector.shape_cast %53 : vector<16x16xf32> to vector<2x8x16xf32>
    %55 = vector.extract_strided_slice %28 {offsets = [0, 16], sizes = [16, 16], strides = [1, 1]} : vector<16x64xf32> to vector<16x16xf32>
    %56 = vector.shape_cast %55 : vector<16x16xf32> to vector<2x8x16xf32>
    %57 = vector.extract_strided_slice %29 {offsets = [0, 16], sizes = [16, 16], strides = [1, 1]} : vector<16x64xf32> to vector<16x16xf32>
    %58 = vector.shape_cast %57 : vector<16x16xf32> to vector<2x8x16xf32>
    "tpu.trace_start"() <{level = 10 : i32, message = "bnd,bmd->bnm"}> : () -> ()
    %cst_21 = arith.constant dense<0.000000e+00> : vector<2x8x8xf32>
    %59 = tpu.matmul %54, %56, %cst_21 {dimension_numbers = #tpu.dot_dimension_numbers<[2], [2], [1], [1], [0, 0, 0, 1, 1, 1], [0], [0]>} : vector<2x8x16xf32>, vector<2x8x16xf32>, vector<2x8x8xf32> -> vector<2x8x8xf32>
    "tpu.trace_stop"() : () -> ()
    %cst_22 = arith.constant dense<0xFF800000> : vector<2x8xf32>
    %60 = vector.multi_reduction <maximumf>, %59, %cst_22 [2] : vector<2x8x8xf32> to vector<2x8xf32>
    %61 = vector.shape_cast %60 : vector<2x8xf32> to vector<2x8x1xf32>
    %62 = vector.broadcast %61 : vector<2x8x1xf32> to vector<2x8x8xf32>
    %63 = arith.subf %59, %62 : vector<2x8x8xf32>
    %64 = math.exp %63 : vector<2x8x8xf32>
    %cst_23 = arith.constant dense<0.000000e+00> : vector<2x8xf32>
    %65 = vector.multi_reduction <add>, %64, %cst_23 [2] : vector<2x8x8xf32> to vector<2x8xf32>
    %66 = vector.shape_cast %65 : vector<2x8xf32> to vector<2x8x1xf32>
    %67 = tpu.reciprocal %66 {approx = true} : vector<2x8x1xf32> -> vector<2x8x1xf32>
    %68 = vector.broadcast %67 : vector<2x8x1xf32> to vector<2x8x8xf32>
    %69 = arith.mulf %64, %68 : vector<2x8x8xf32>
    "tpu.trace_start"() <{level = 10 : i32, message = "bnm,bmd->bnd"}> : () -> ()
    %cst_24 = arith.constant dense<0.000000e+00> : vector<2x8x16xf32>
    %70 = tpu.matmul %69, %58, %cst_24 {dimension_numbers = #tpu.dot_dimension_numbers<[2], [1], [1], [2], [0, 0, 0, 1, 1, 2], [0], [0]>} : vector<2x8x8xf32>, vector<2x8x16xf32>, vector<2x8x16xf32> -> vector<2x8x16xf32>
    "tpu.trace_stop"() : () -> ()
    %71 = vector.shape_cast %70 : vector<2x8x16xf32> to vector<16x16xf32>
    %c16 = arith.constant 16 : index
    %c0_25 = arith.constant 0 : index
    %72 = vector.load %arg4[%c16, %c0_25] : memref<64x32xf32, #tpu.memory_space<vmem>>, vector<16x32xf32>
    %cst_26 = arith.constant dense<0.000000e+00> : vector<16x32xf32>
    %73 = tpu.matmul %71, %72, %cst_26 {dimension_numbers = #tpu.dot_dimension_numbers<[1], [0], [0], [1], [0, 0, 1, 1], [], []>} : vector<16x16xf32>, vector<16x32xf32>, vector<16x32xf32> -> vector<16x32xf32>
    %74 = arith.addf %52, %73 : vector<16x32xf32>
    %75 = vector.extract_strided_slice %27 {offsets = [0, 32], sizes = [16, 16], strides = [1, 1]} : vector<16x64xf32> to vector<16x16xf32>
    %76 = vector.shape_cast %75 : vector<16x16xf32> to vector<2x8x16xf32>
    %77 = vector.extract_strided_slice %28 {offsets = [0, 32], sizes = [16, 16], strides = [1, 1]} : vector<16x64xf32> to vector<16x16xf32>
    %78 = vector.shape_cast %77 : vector<16x16xf32> to vector<2x8x16xf32>
    %79 = vector.extract_strided_slice %29 {offsets = [0, 32], sizes = [16, 16], strides = [1, 1]} : vector<16x64xf32> to vector<16x16xf32>
    %80 = vector.shape_cast %79 : vector<16x16xf32> to vector<2x8x16xf32>
    "tpu.trace_start"() <{level = 10 : i32, message = "bnd,bmd->bnm"}> : () -> ()
    %cst_27 = arith.constant dense<0.000000e+00> : vector<2x8x8xf32>
    %81 = tpu.matmul %76, %78, %cst_27 {dimension_numbers = #tpu.dot_dimension_numbers<[2], [2], [1], [1], [0, 0, 0, 1, 1, 1], [0], [0]>} : vector<2x8x16xf32>, vector<2x8x16xf32>, vector<2x8x8xf32> -> vector<2x8x8xf32>
    "tpu.trace_stop"() : () -> ()
    %cst_28 = arith.constant dense<0xFF800000> : vector<2x8xf32>
    %82 = vector.multi_reduction <maximumf>, %81, %cst_28 [2] : vector<2x8x8xf32> to vector<2x8xf32>
    %83 = vector.shape_cast %82 : vector<2x8xf32> to vector<2x8x1xf32>
    %84 = vector.broadcast %83 : vector<2x8x1xf32> to vector<2x8x8xf32>
    %85 = arith.subf %81, %84 : vector<2x8x8xf32>
    %86 = math.exp %85 : vector<2x8x8xf32>
    %cst_29 = arith.constant dense<0.000000e+00> : vector<2x8xf32>
    %87 = vector.multi_reduction <add>, %86, %cst_29 [2] : vector<2x8x8xf32> to vector<2x8xf32>
    %88 = vector.shape_cast %87 : vector<2x8xf32> to vector<2x8x1xf32>
    %89 = tpu.reciprocal %88 {approx = true} : vector<2x8x1xf32> -> vector<2x8x1xf32>
    %90 = vector.broadcast %89 : vector<2x8x1xf32> to vector<2x8x8xf32>
    %91 = arith.mulf %86, %90 : vector<2x8x8xf32>
    "tpu.trace_start"() <{level = 10 : i32, message = "bnm,bmd->bnd"}> : () -> ()
    %cst_30 = arith.constant dense<0.000000e+00> : vector<2x8x16xf32>
    %92 = tpu.matmul %91, %80, %cst_30 {dimension_numbers = #tpu.dot_dimension_numbers<[2], [1], [1], [2], [0, 0, 0, 1, 1, 2], [0], [0]>} : vector<2x8x8xf32>, vector<2x8x16xf32>, vector<2x8x16xf32> -> vector<2x8x16xf32>
    "tpu.trace_stop"() : () -> ()
    %93 = vector.shape_cast %92 : vector<2x8x16xf32> to vector<16x16xf32>
    %c32 = arith.constant 32 : index
    %c0_31 = arith.constant 0 : index
    %94 = vector.load %arg4[%c32, %c0_31] : memref<64x32xf32, #tpu.memory_space<vmem>>, vector<16x32xf32>
    %cst_32 = arith.constant dense<0.000000e+00> : vector<16x32xf32>
    %95 = tpu.matmul %93, %94, %cst_32 {dimension_numbers = #tpu.dot_dimension_numbers<[1], [0], [0], [1], [0, 0, 1, 1], [], []>} : vector<16x16xf32>, vector<16x32xf32>, vector<16x32xf32> -> vector<16x32xf32>
    %96 = arith.addf %74, %95 : vector<16x32xf32>
    %97 = vector.extract_strided_slice %27 {offsets = [0, 48], sizes = [16, 16], strides = [1, 1]} : vector<16x64xf32> to vector<16x16xf32>
    %98 = vector.shape_cast %97 : vector<16x16xf32> to vector<2x8x16xf32>
    %99 = vector.extract_strided_slice %28 {offsets = [0, 48], sizes = [16, 16], strides = [1, 1]} : vector<16x64xf32> to vector<16x16xf32>
    %100 = vector.shape_cast %99 : vector<16x16xf32> to vector<2x8x16xf32>
    %101 = vector.extract_strided_slice %29 {offsets = [0, 48], sizes = [16, 16], strides = [1, 1]} : vector<16x64xf32> to vector<16x16xf32>
    %102 = vector.shape_cast %101 : vector<16x16xf32> to vector<2x8x16xf32>
    "tpu.trace_start"() <{level = 10 : i32, message = "bnd,bmd->bnm"}> : () -> ()
    %cst_33 = arith.constant dense<0.000000e+00> : vector<2x8x8xf32>
    %103 = tpu.matmul %98, %100, %cst_33 {dimension_numbers = #tpu.dot_dimension_numbers<[2], [2], [1], [1], [0, 0, 0, 1, 1, 1], [0], [0]>} : vector<2x8x16xf32>, vector<2x8x16xf32>, vector<2x8x8xf32> -> vector<2x8x8xf32>
    "tpu.trace_stop"() : () -> ()
    %cst_34 = arith.constant dense<0xFF800000> : vector<2x8xf32>
    %104 = vector.multi_reduction <maximumf>, %103, %cst_34 [2] : vector<2x8x8xf32> to vector<2x8xf32>
    %105 = vector.shape_cast %104 : vector<2x8xf32> to vector<2x8x1xf32>
    %106 = vector.broadcast %105 : vector<2x8x1xf32> to vector<2x8x8xf32>
    %107 = arith.subf %103, %106 : vector<2x8x8xf32>
    %108 = math.exp %107 : vector<2x8x8xf32>
    %cst_35 = arith.constant dense<0.000000e+00> : vector<2x8xf32>
    %109 = vector.multi_reduction <add>, %108, %cst_35 [2] : vector<2x8x8xf32> to vector<2x8xf32>
    %110 = vector.shape_cast %109 : vector<2x8xf32> to vector<2x8x1xf32>
    %111 = tpu.reciprocal %110 {approx = true} : vector<2x8x1xf32> -> vector<2x8x1xf32>
    %112 = vector.broadcast %111 : vector<2x8x1xf32> to vector<2x8x8xf32>
    %113 = arith.mulf %108, %112 : vector<2x8x8xf32>
    "tpu.trace_start"() <{level = 10 : i32, message = "bnm,bmd->bnd"}> : () -> ()
    %cst_36 = arith.constant dense<0.000000e+00> : vector<2x8x16xf32>
    %114 = tpu.matmul %113, %102, %cst_36 {dimension_numbers = #tpu.dot_dimension_numbers<[2], [1], [1], [2], [0, 0, 0, 1, 1, 2], [0], [0]>} : vector<2x8x8xf32>, vector<2x8x16xf32>, vector<2x8x16xf32> -> vector<2x8x16xf32>
    "tpu.trace_stop"() : () -> ()
    %115 = vector.shape_cast %114 : vector<2x8x16xf32> to vector<16x16xf32>
    %c48 = arith.constant 48 : index
    %c0_37 = arith.constant 0 : index
    %116 = vector.load %arg4[%c48, %c0_37] : memref<64x32xf32, #tpu.memory_space<vmem>>, vector<16x32xf32>
    %cst_38 = arith.constant dense<0.000000e+00> : vector<16x32xf32>
    %117 = tpu.matmul %115, %116, %cst_38 {dimension_numbers = #tpu.dot_dimension_numbers<[1], [0], [0], [1], [0, 0, 1, 1], [], []>} : vector<16x16xf32>, vector<16x32xf32>, vector<16x32xf32> -> vector<16x32xf32>
    %118 = arith.addf %96, %117 : vector<16x32xf32>
    %c0_39 = arith.constant 0 : index
    %c0_40 = arith.constant 0 : index
    %119 = vector.load %arg5[%c0_39, %c0_40] : memref<1x32xf32, #tpu.memory_space<vmem>>, vector<1x32xf32>
    %120 = vector.broadcast %119 : vector<1x32xf32> to vector<16x32xf32>
    %121 = arith.addf %118, %120 : vector<16x32xf32>
    %c0_41 = arith.constant 0 : index
    %c0_42 = arith.constant 0 : index
    %122 = vector.load %arg6[%c0_41, %c0_42] : memref<16x32xf32, #tpu.memory_space<vmem>>, vector<16x32xf32>
    tpu.vector_store %arg6[%c0_41, %c0_42], %121 {strides = array<i32>} : memref<16x32xf32, #tpu.memory_space<vmem>>, vector<16x32xf32>,
    return
  }
}

</mosaic_0001>

<llo_original>
// kernel: tpu_custom_call.1
$region0: #{tpu_custom_call.1}
  #allocation0 [shape = 'u32[]', space=smem, size = 0x4, offset = 0x4, fixed_abs, tag = 'smem constant byte address 0x4 - core index']
  #allocation1 [shape = 'u32[72,128]{1,0:T(1,128)}', space=vmem, size = 0x9000, scoped, tag = 'internal scratch']
  %s0 = inlined_call_operand.vmem [shape: f32[16,32], index: 0, kind: input, shape index: {}]
  %s1 = inlined_call_operand.vmem [shape: f32[1,32], index: 1, kind: input, shape index: {}]
  %s2 = inlined_call_operand.vmem [shape: f32[1,32], index: 2, kind: input, shape index: {}]
  %s3 = inlined_call_operand.vmem [shape: f32[32,192], index: 3, kind: input, shape index: {}]
  %s4 = inlined_call_operand.vmem [shape: f32[64,32], index: 4, kind: input, shape index: {}]
  %s5 = inlined_call_operand.vmem [shape: f32[1,32], index: 5, kind: input, shape index: {}]
  %s6 = inlined_call_operand.hbm [shape: f32[16,32], index: 6, kind: output, shape index: {}]
  %s7 = sld [smem:[#allocation0]]
  $region34: #{tpu_custom_call.1} parent=0
    _
  %s9 = ssub.s32 1, %s7
  %s10 = scalar_select 0, %s9, %s7
  $region1: #{tpu_custom_call.1} parent=0
    #allocation2 [shape = 'u8[8192]{0}', space=vmem, size = 0x2000, scoped, tag = 'output window, operand 0, single buffered']
    #allocation3 [shape = 's32[1]{0}', space=sflag, size = 0x4, scoped, tag = 'scoped memory for tpu_custom_call.1']
    %11 = vsyncpa [#allocation3], 0
    // Predicated region
    $region2: #{tpu_custom_call.1} parent=1 // pred_check
      _
    $region3: #{tpu_custom_call.1} parent=1 // pred_check_branch
      %13 = sbr.rel (0) target = $region5
    $region4: #{tpu_custom_call.1} parent=1 // pred_region
      _
    $region5: #{tpu_custom_call.1} parent=1 // pred_fallthru
      _
    // Predicated region
    $region6: #{tpu_custom_call.1} parent=1 // pred_check
      _
    $region7: #{tpu_custom_call.1} parent=1 // pred_check_branch
      %15 = sbr.rel (0) target = $region9
    $region8: #{tpu_custom_call.1} parent=1 // pred_region
      _
    $region9: #{tpu_custom_call.1} parent=1 // pred_fallthru
      _
    // Predicated region
    $region10: #{tpu_custom_call.1} parent=1 // pred_check
      _
    $region11: #{tpu_custom_call.1} parent=1 // pred_check_branch
      %17 = sbr.rel (0) target = $region13
    $region12: #{tpu_custom_call.1} parent=1 // pred_region
      _
    $region13: #{tpu_custom_call.1} parent=1 // pred_fallthru
      _
    // Predicated region
    $region14: #{tpu_custom_call.1} parent=1 // pred_check
      _
    $region15: #{tpu_custom_call.1} parent=1 // pred_check_branch
      %19 = sbr.rel (0) target = $region17
    $region16: #{tpu_custom_call.1} parent=1 // pred_region
      _
    $region17: #{tpu_custom_call.1} parent=1 // pred_fallthru
      _
    // Predicated region
    $region18: #{tpu_custom_call.1} parent=1 // pred_check
      _
    $region19: #{tpu_custom_call.1} parent=1 // pred_check_branch
      %21 = sbr.rel (0) target = $region21
    $region20: #{tpu_custom_call.1} parent=1 // pred_region
      _
    $region21: #{tpu_custom_call.1} parent=1 // pred_fallthru
      _
    // Predicated region
    $region22: #{tpu_custom_call.1} parent=1 // pred_check
      _
    $region23: #{tpu_custom_call.1} parent=1 // pred_check_branch
      %23 = sbr.rel (0) target = $region25
    $region24: #{tpu_custom_call.1} parent=1 // pred_region
      _
    $region25: #{tpu_custom_call.1} parent=1 // pred_fallthru
      _
    %v24 = vld [vmem:[%s0] sm:$0xff]
    %v25 = vld [vmem:[%s0 + $0x8] sm:$0xff]
    %vm26 = vcmask 261120
    %v27 = vsel %vm26, %v24, 0.0
    %28 = vadd.xlane.f32.xlu0 %v27
    %v29 = vpop.xlane.xlu0 %28
    %v30 = vsel %vm26, %v25, 0.0
    %31 = vadd.xlane.f32.xlu0 %v30
    %v32 = vpop.xlane.xlu0 %31
    %v33 = vrcp.pop 32.0
    %v34 = vmul.f32 32.0, %v33
    %v35 = vsub.f32 1.0, %v34
    %v36 = vmul.f32 %v33, %v35
    %v37 = vadd.f32 %v33, %v36
    %vm38 = vweird.f32 %v33
    %v39 = vsel %vm38, %v33, %v37
    %v40 = vmul.f32 %v29, %v39
    %v41 = vmul.f32 %v32, %v39
    %v42 = vsub.f32 %v24, %v40
    %v43 = vsub.f32 %v25, %v41
    %v44 = vmul.f32 %v42, %v42
    %v45 = vmul.f32 %v43, %v43
    %v46 = vsel %vm26, %v44, 0.0
    %47 = vadd.xlane.f32.xlu0 %v46
    %v48 = vpop.xlane.xlu0 %47
    %v49 = vsel %vm26, %v45, 0.0
    %50 = vadd.xlane.f32.xlu0 %v49
    %v51 = vpop.xlane.xlu0 %50
    %v52 = vmul.f32 %v48, %v39
    %v53 = vmul.f32 %v51, %v39
    %v54 = vadd.f32 %v52, 1e-05
    %v55 = vadd.f32 %v53, 1e-05
    %v56 = vrsqrt.pop %v54
    %v57 = vmul.f32 %v56, %v54
    %v58 = vmul.f32 %v57, %v56
    %v59 = vmul.f32 0.5, %v58
    %v60 = vsub.f32 1.5, %v59
    %v61 = vmul.f32 %v56, %v60
    %vm62 = vweird.f32 %v54
    %vm63 = vweird.f32 %v56
    %vm64 = vmor %vm62, %vm63
    %v65 = vsel %vm64, %v56, %v61
    %v66 = vrsqrt.pop %v55
    %v67 = vmul.f32 %v66, %v55
    %v68 = vmul.f32 %v67, %v66
    %v69 = vmul.f32 0.5, %v68
    %v70 = vsub.f32 1.5, %v69
    %v71 = vmul.f32 %v66, %v70
    %vm72 = vweird.f32 %v55
    %vm73 = vweird.f32 %v66
    %vm74 = vmor %vm72, %vm73
    %v75 = vsel %vm74, %v66, %v71
    %v76 = vmul.f32 %v42, %v65
    %v77 = vmul.f32 %v43, %v75
    %v78 = vld [vmem:[%s1] sm:$0x1]
    %v80 = vperm.slane %v78, 0
    %v82 = vmul.f32 %v76, %v80
    %v83 = vmul.f32 %v77, %v80
    %v84 = vld [vmem:[%s2] sm:$0x1]
    %v86 = vperm.slane %v84, 0
    %v88 = vadd.f32 %v82, %v86
    %v89 = vadd.f32 %v83, %v86
    %v90 = vld [vmem:[%s3] sm:$0xff]
    %v91 = vld [vmem:[%s3 + $0x8] sm:$0xff]
    %v92 = vld [vmem:[%s3 + $0x10] sm:$0xff]
    %v93 = vld [vmem:[%s3 + $0x18] sm:$0xff]
    %v94 = vld [vmem:[%s3 + $0x20] sm:$0xff]
    %v95 = vld [vmem:[%s3 + $0x28] sm:$0xff]
    %v96 = vld [vmem:[%s3 + $0x30] sm:$0xff]
    %v97 = vld [vmem:[%s3 + $0x38] sm:$0xff]
    %v99 = vsel %vm26, %v88, 0
    %v102 = vsel %vm26, %v89, 0
    %104 = vmatpush.msra.mxu0 0.0
    %105 = vmatpush.msra.mxu0 0.0
    %106 = vmatpush.msra.mxu0 0.0
    %107 = vmatpush.msra.mxu0 0.0
    %108 = vmatpush.msra.mxu0 0.0
    %109 = vmatpush.msra.mxu0 0.0
    %110 = vmatpush.msra.mxu0 0.0
    %111 = vmatpush.msra.mxu0 0.0
    %112 = vmatpush.msra.mxu0 0.0
    %113 = vmatpush.msra.mxu0 0.0
    %114 = vmatpush.msra.mxu0 0.0
    %115 = vmatpush.msra.mxu0 0.0
    %116 = vmatpush.msra.mxu0 %v96
    %117 = vmatpush.msra.mxu0 %v94
    %118 = vmatpush.msra.mxu0 %v92
    %119 = vmatpush.msra.mxu0 %v90
    %120 = vmatmul.f32.gmra.mxu0 %v99
    %v121 = vpop.f32.mrf.mxu0
    %v122 = vadd.f32 0.0, %v121
    %123 = vmatmul.f32.gmra.mxu0 %v102
    %v124 = vpop.f32.mrf.mxu0
    %v125 = vadd.f32 0.0, %v124
    %126 = vdwg.mxu0
    %127 = vmatpush.msra.mxu0 0.0
    %128 = vmatpush.msra.mxu0 0.0
    %129 = vmatpush.msra.mxu0 0.0
    %130 = vmatpush.msra.mxu0 0.0
    %131 = vmatpush.msra.mxu0 0.0
    %132 = vmatpush.msra.mxu0 0.0
    %133 = vmatpush.msra.mxu0 0.0
    %134 = vmatpush.msra.mxu0 0.0
    %135 = vmatpush.msra.mxu0 0.0
    %136 = vmatpush.msra.mxu0 0.0
    %137 = vmatpush.msra.mxu0 0.0
    %138 = vmatpush.msra.mxu0 0.0
    %139 = vmatpush.msra.mxu0 %v97
    %140 = vmatpush.msra.mxu0 %v95
    %141 = vmatpush.msra.mxu0 %v93
    %142 = vmatpush.msra.mxu0 %v91
    %143 = vmatmul.f32.gmra.mxu0 %v99
    %v144 = vpop.f32.mrf.mxu0
    %v145 = vadd.f32 0.0, %v144
    %146 = vmatmul.f32.gmra.mxu0 %v102
    %v147 = vpop.f32.mrf.mxu0
    %v148 = vadd.f32 0.0, %v147
    %149 = vdwg.mxu0
    %v150 = vmul.f32 %v122, 0.25
    %v151 = vmul.f32 %v125, 0.25
    %153 = vrot.lane.b32.xlu0 %v122, 64
    %v154 = vpop.permute.xlu0 %153
    %vm155 = vcmask 130048
    %v157 = vsel %vm155, %v150, 0
    %v159 = vsel %vm155, %v154, 0
    %161 = vmatpush.xpose.msra.mxu0 0.0
    %162 = vmatpush.xpose.msra.mxu0 0.0
    %163 = vmatpush.xpose.msra.mxu0 0.0
    %164 = vmatpush.xpose.msra.mxu0 0.0
    %165 = vmatpush.xpose.msra.mxu0 0.0
    %166 = vmatpush.xpose.msra.mxu0 0.0
    %167 = vmatpush.xpose.msra.mxu0 0.0
    %168 = vmatpush.xpose.msra.mxu0 0.0
    %169 = vmatpush.xpose.msra.mxu0 0.0
    %170 = vmatpush.xpose.msra.mxu0 0.0
    %171 = vmatpush.xpose.msra.mxu0 0.0
    %172 = vmatpush.xpose.msra.mxu0 0.0
    %173 = vmatpush.xpose.msra.mxu0 0.0
    %174 = vmatpush.xpose.msra.mxu0 0.0
    %175 = vmatpush.xpose.msra.mxu0 0.0
    %176 = vmatpush.xpose.msra.mxu0 %v159
    %177 = vmatmul.f32.gmra.mxu0 %v157
    %v178 = vpop.f32.mrf.mxu0
    %v179 = vadd.f32 0.0, %v178
    %180 = vdwg.mxu0
    %182 = vrot.lane.b32.xlu0 %v125, 64
    %v183 = vpop.permute.xlu0 %182
    %v185 = vsel %vm155, %v151, 0
    %v187 = vsel %vm155, %v183, 0
    %189 = vmatpush.xpose.msra.mxu0 0.0
    %190 = vmatpush.xpose.msra.mxu0 0.0
    %191 = vmatpush.xpose.msra.mxu0 0.0
    %192 = vmatpush.xpose.msra.mxu0 0.0
    %193 = vmatpush.xpose.msra.mxu0 0.0
    %194 = vmatpush.xpose.msra.mxu0 0.0
    %195 = vmatpush.xpose.msra.mxu0 0.0
    %196 = vmatpush.xpose.msra.mxu0 0.0
    %197 = vmatpush.xpose.msra.mxu0 0.0
    %198 = vmatpush.xpose.msra.mxu0 0.0
    %199 = vmatpush.xpose.msra.mxu0 0.0
    %200 = vmatpush.xpose.msra.mxu0 0.0
    %201 = vmatpush.xpose.msra.mxu0 0.0
    %202 = vmatpush.xpose.msra.mxu0 0.0
    %203 = vmatpush.xpose.msra.mxu0 0.0
    %204 = vmatpush.xpose.msra.mxu0 %v187
    %205 = vmatmul.f32.gmra.mxu0 %v185
    %v206 = vpop.f32.mrf.mxu0
    %v207 = vadd.f32 0.0, %v206
    %208 = vdwg.mxu0
    %vm209 = vcmask 64512
    %v210 = vsel %vm209, %v179, -inf
    %211 = vmax.xlane.f32.xlu0 %v210
    %v212 = vpop.xlane.xlu0 %211
    %v213 = vsel %vm209, %v207, -inf
    %214 = vmax.xlane.f32.xlu0 %v213
    %v215 = vpop.xlane.xlu0 %214
    %v216 = vsub.f32 %v179, %v212
    %v217 = vsub.f32 %v207, %v215
    %v218 = vmul.f32 %v216, 1.442695
    %v219 = vpow.pop %v218
    %v220 = vmul.f32 %v217, 1.442695
    %v221 = vpow.pop %v220
    %v222 = vsel %vm209, %v219, 0.0
    %223 = vadd.xlane.f32.xlu0 %v222
    %v224 = vpop.xlane.xlu0 %223
    %v225 = vsel %vm209, %v221, 0.0
    %226 = vadd.xlane.f32.xlu0 %v225
    %v227 = vpop.xlane.xlu0 %226
    %v228 = vrcp.pop %v224
    %v229 = vrcp.pop %v227
    %v230 = vmul.f32 %v219, %v228
    %v231 = vmul.f32 %v221, %v229
    %v233 = vsel %vm209, %v230, 0
    %235 = vmatpush.msra.mxu0 0.0
    %236 = vmatpush.msra.mxu0 0.0
    %237 = vmatpush.msra.mxu0 0.0
    %238 = vmatpush.msra.mxu0 0.0
    %239 = vmatpush.msra.mxu0 0.0
    %240 = vmatpush.msra.mxu0 0.0
    %241 = vmatpush.msra.mxu0 0.0
    %242 = vmatpush.msra.mxu0 0.0
    %243 = vmatpush.msra.mxu0 0.0
    %244 = vmatpush.msra.mxu0 0.0
    %245 = vmatpush.msra.mxu0 0.0
    %246 = vmatpush.msra.mxu0 0.0
    %247 = vmatpush.msra.mxu0 0.0
    %248 = vmatpush.msra.mxu0 0.0
    %249 = vmatpush.msra.mxu0 0.0
    %250 = vmatpush.msra.mxu0 %v145
    %251 = vmatmul.f32.gmra.mxu0 %v233
    %v252 = vpop.f32.mrf.mxu0
    %v253 = vadd.f32 0.0, %v252
    %254 = vdwg.mxu0
    %v256 = vsel %vm209, %v231, 0
    %258 = vmatpush.msra.mxu0 0.0
    %259 = vmatpush.msra.mxu0 0.0
    %260 = vmatpush.msra.mxu0 0.0
    %261 = vmatpush.msra.mxu0 0.0
    %262 = vmatpush.msra.mxu0 0.0
    %263 = vmatpush.msra.mxu0 0.0
    %264 = vmatpush.msra.mxu0 0.0
    %265 = vmatpush.msra.mxu0 0.0
    %266 = vmatpush.msra.mxu0 0.0
    %267 = vmatpush.msra.mxu0 0.0
    %268 = vmatpush.msra.mxu0 0.0
    %269 = vmatpush.msra.mxu0 0.0
    %270 = vmatpush.msra.mxu0 0.0
    %271 = vmatpush.msra.mxu0 0.0
    %272 = vmatpush.msra.mxu0 0.0
    %273 = vmatpush.msra.mxu0 %v148
    %274 = vmatmul.f32.gmra.mxu0 %v256
    %v275 = vpop.f32.mrf.mxu0
    %v276 = vadd.f32 0.0, %v275
    %277 = vdwg.mxu0
    %v278 = vld [vmem:[%s4] sm:$0xff]
    %v279 = vld [vmem:[%s4 + $0x8] sm:$0xff]
    %280 = vrot.lane.b32.xlu0 %v150, 112
    %v281 = vpop.permute.xlu0 %280
    %282 = vrot.lane.b32.xlu0 %v122, 48
    %v283 = vpop.permute.xlu0 %282
    %v284 = vsel %vm155, %v281, 0
    %v286 = vsel %vm155, %v283, 0
    %288 = vmatpush.xpose.msra.mxu0 0.0
    %289 = vmatpush.xpose.msra.mxu0 0.0
    %290 = vmatpush.xpose.msra.mxu0 0.0
    %291 = vmatpush.xpose.msra.mxu0 0.0
    %292 = vmatpush.xpose.msra.mxu0 0.0
    %293 = vmatpush.xpose.msra.mxu0 0.0
    %294 = vmatpush.xpose.msra.mxu0 0.0
    %295 = vmatpush.xpose.msra.mxu0 0.0
    %296 = vmatpush.xpose.msra.mxu0 0.0
    %297 = vmatpush.xpose.msra.mxu0 0.0
    %298 = vmatpush.xpose.msra.mxu0 0.0
    %299 = vmatpush.xpose.msra.mxu0 0.0
    %300 = vmatpush.xpose.msra.mxu0 0.0
    %301 = vmatpush.xpose.msra.mxu0 0.0
    %302 = vmatpush.xpose.msra.mxu0 0.0
    %303 = vmatpush.xpose.msra.mxu0 %v286
    %304 = vmatmul.f32.gmra.mxu0 %v284
    %v305 = vpop.f32.mrf.mxu0
    %v306 = vadd.f32 0.0, %v305
    %307 = vdwg.mxu0
    %308 = vrot.lane.b32.xlu0 %v151, 112
    %v309 = vpop.permute.xlu0 %308
    %310 = vrot.lane.b32.xlu0 %v125, 48
    %v311 = vpop.permute.xlu0 %310
    %v312 = vsel %vm155, %v309, 0
    %v314 = vsel %vm155, %v311, 0
    %316 = vmatpush.xpose.msra.mxu0 0.0
    %317 = vmatpush.xpose.msra.mxu0 0.0
    %318 = vmatpush.xpose.msra.mxu0 0.0
    %319 = vmatpush.xpose.msra.mxu0 0.0
    %320 = vmatpush.xpose.msra.mxu0 0.0
    %321 = vmatpush.xpose.msra.mxu0 0.0
    %322 = vmatpush.xpose.msra.mxu0 0.0
    %323 = vmatpush.xpose.msra.mxu0 0.0
    %324 = vmatpush.xpose.msra.mxu0 0.0
    %325 = vmatpush.xpose.msra.mxu0 0.0
    %326 = vmatpush.xpose.msra.mxu0 0.0
    %327 = vmatpush.xpose.msra.mxu0 0.0
    %328 = vmatpush.xpose.msra.mxu0 0.0
    %329 = vmatpush.xpose.msra.mxu0 0.0
    %330 = vmatpush.xpose.msra.mxu0 0.0
    %331 = vmatpush.xpose.msra.mxu0 %v314
    %332 = vmatmul.f32.gmra.mxu0 %v312
    %v333 = vpop.f32.mrf.mxu0
    %v334 = vadd.f32 0.0, %v333
    %335 = vdwg.mxu0
    %v336 = vsel %vm209, %v306, -inf
    %337 = vmax.xlane.f32.xlu0 %v336
    %v338 = vpop.xlane.xlu0 %337
    %v339 = vsel %vm209, %v334, -inf
    %340 = vmax.xlane.f32.xlu0 %v339
    %v341 = vpop.xlane.xlu0 %340
    %v342 = vsub.f32 %v306, %v338
    %v343 = vsub.f32 %v334, %v341
    %v344 = vmul.f32 %v342, 1.442695
    %v345 = vpow.pop %v344
    %v346 = vmul.f32 %v343, 1.442695
    %v347 = vpow.pop %v346
    %v348 = vsel %vm209, %v345, 0.0
    %349 = vadd.xlane.f32.xlu0 %v348
    %v350 = vpop.xlane.xlu0 %349
    %v351 = vsel %vm209, %v347, 0.0
    %352 = vadd.xlane.f32.xlu0 %v351
    %v353 = vpop.xlane.xlu0 %352
    %v354 = vrcp.pop %v350
    %v355 = vrcp.pop %v353
    %v356 = vmul.f32 %v345, %v354
    %v357 = vmul.f32 %v347, %v355
    %359 = vrot.lane.b32.xlu0 %v145, 112
    %v360 = vpop.permute.xlu0 %359
    %v363 = vsel %vm209, %v356, 0
    %365 = vmatpush.msra.mxu0 0.0
    %366 = vmatpush.msra.mxu0 0.0
    %367 = vmatpush.msra.mxu0 0.0
    %368 = vmatpush.msra.mxu0 0.0
    %369 = vmatpush.msra.mxu0 0.0
    %370 = vmatpush.msra.mxu0 0.0
    %371 = vmatpush.msra.mxu0 0.0
    %372 = vmatpush.msra.mxu0 0.0
    %373 = vmatpush.msra.mxu0 0.0
    %374 = vmatpush.msra.mxu0 0.0
    %375 = vmatpush.msra.mxu0 0.0
    %376 = vmatpush.msra.mxu0 0.0
    %377 = vmatpush.msra.mxu0 0.0
    %378 = vmatpush.msra.mxu0 0.0
    %379 = vmatpush.msra.mxu0 0.0
    %380 = vmatpush.msra.mxu0 %v360
    %381 = vmatmul.f32.gmra.mxu0 %v363
    %v382 = vpop.f32.mrf.mxu0
    %v383 = vadd.f32 0.0, %v382
    %384 = vdwg.mxu0
    %386 = vrot.lane.b32.xlu0 %v148, 112
    %v387 = vpop.permute.xlu0 %386
    %v390 = vsel %vm209, %v357, 0
    %392 = vmatpush.msra.mxu0 0.0
    %393 = vmatpush.msra.mxu0 0.0
    %394 = vmatpush.msra.mxu0 0.0
    %395 = vmatpush.msra.mxu0 0.0
    %396 = vmatpush.msra.mxu0 0.0
    %397 = vmatpush.msra.mxu0 0.0
    %398 = vmatpush.msra.mxu0 0.0
    %399 = vmatpush.msra.mxu0 0.0
    %400 = vmatpush.msra.mxu0 0.0
    %401 = vmatpush.msra.mxu0 0.0
    %402 = vmatpush.msra.mxu0 0.0
    %403 = vmatpush.msra.mxu0 0.0
    %404 = vmatpush.msra.mxu0 0.0
    %405 = vmatpush.msra.mxu0 0.0
    %406 = vmatpush.msra.mxu0 0.0
    %407 = vmatpush.msra.mxu0 %v387
    %408 = vmatmul.f32.gmra.mxu0 %v390
    %v409 = vpop.f32.mrf.mxu0
    %v410 = vadd.f32 0.0, %v409
    %411 = vdwg.mxu0
    %v412 = vld [vmem:[%s4 + $0x10] sm:$0xff]
    %v413 = vld [vmem:[%s4 + $0x18] sm:$0xff]
    %v415 = vsel %vm155, %v383, 0
    %v418 = vsel %vm155, %v410, 0
    %420 = vmatpush.msra.mxu0 0.0
    %421 = vmatpush.msra.mxu0 0.0
    %422 = vmatpush.msra.mxu0 0.0
    %423 = vmatpush.msra.mxu0 0.0
    %424 = vmatpush.msra.mxu0 0.0
    %425 = vmatpush.msra.mxu0 0.0
    %426 = vmatpush.msra.mxu0 0.0
    %427 = vmatpush.msra.mxu0 0.0
    %428 = vmatpush.msra.mxu0 0.0
    %429 = vmatpush.msra.mxu0 0.0
    %430 = vmatpush.msra.mxu0 0.0
    %431 = vmatpush.msra.mxu0 0.0
    %432 = vmatpush.msra.mxu0 0.0
    %433 = vmatpush.msra.mxu0 0.0
    %434 = vmatpush.msra.mxu0 %v413
    %435 = vmatpush.msra.mxu0 %v412
    %436 = vmatmul.f32.gmra.mxu0 %v415
    %v437 = vpop.f32.mrf.mxu0
    %v438 = vadd.f32 0.0, %v437
    %439 = vmatmul.f32.gmra.mxu0 %v418
    %v440 = vpop.f32.mrf.mxu0
    %v441 = vadd.f32 0.0, %v440
    %442 = vdwg.mxu0
    %v444 = vsel %vm155, %v253, 0
    %v447 = vsel %vm155, %v276, 0
    %449 = vmatpush.msra.mxu0 0.0
    %450 = vmatpush.msra.mxu0 0.0
    %451 = vmatpush.msra.mxu0 0.0
    %452 = vmatpush.msra.mxu0 0.0
    %453 = vmatpush.msra.mxu0 0.0
    %454 = vmatpush.msra.mxu0 0.0
    %455 = vmatpush.msra.mxu0 0.0
    %456 = vmatpush.msra.mxu0 0.0
    %457 = vmatpush.msra.mxu0 0.0
    %458 = vmatpush.msra.mxu0 0.0
    %459 = vmatpush.msra.mxu0 0.0
    %460 = vmatpush.msra.mxu0 0.0
    %461 = vmatpush.msra.mxu0 0.0
    %462 = vmatpush.msra.mxu0 0.0
    %463 = vmatpush.msra.mxu0 %v279
    %464 = vmatpush.msra.mxu0 %v278
    %465 = vmatmul.f32.gmra.mxu0 %v444
    %v466 = vpop.f32.mrf.mxu0
    %v467 = vadd.f32 %v438, %v466
    %468 = vmatmul.f32.gmra.mxu0 %v447
    %v469 = vpop.f32.mrf.mxu0
    %v470 = vadd.f32 %v441, %v469
    %471 = vdwg.mxu0
    %472 = vrot.lane.b32.xlu0 %v150, 96
    %v473 = vpop.permute.xlu0 %472
    %474 = vrot.lane.b32.xlu0 %v122, 32
    %v475 = vpop.permute.xlu0 %474
    %v476 = vsel %vm155, %v473, 0
    %v478 = vsel %vm155, %v475, 0
    %480 = vmatpush.xpose.msra.mxu0 0.0
    %481 = vmatpush.xpose.msra.mxu0 0.0
    %482 = vmatpush.xpose.msra.mxu0 0.0
    %483 = vmatpush.xpose.msra.mxu0 0.0
    %484 = vmatpush.xpose.msra.mxu0 0.0
    %485 = vmatpush.xpose.msra.mxu0 0.0
    %486 = vmatpush.xpose.msra.mxu0 0.0
    %487 = vmatpush.xpose.msra.mxu0 0.0
    %488 = vmatpush.xpose.msra.mxu0 0.0
    %489 = vmatpush.xpose.msra.mxu0 0.0
    %490 = vmatpush.xpose.msra.mxu0 0.0
    %491 = vmatpush.xpose.msra.mxu0 0.0
    %492 = vmatpush.xpose.msra.mxu0 0.0
    %493 = vmatpush.xpose.msra.mxu0 0.0
    %494 = vmatpush.xpose.msra.mxu0 0.0
    %495 = vmatpush.xpose.msra.mxu0 %v478
    %496 = vmatmul.f32.gmra.mxu0 %v476
    %v497 = vpop.f32.mrf.mxu0
    %v498 = vadd.f32 0.0, %v497
    %499 = vdwg.mxu0
    %500 = vrot.lane.b32.xlu0 %v151, 96
    %v501 = vpop.permute.xlu0 %500
    %502 = vrot.lane.b32.xlu0 %v125, 32
    %v503 = vpop.permute.xlu0 %502
    %v504 = vsel %vm155, %v501, 0
    %v506 = vsel %vm155, %v503, 0
    %508 = vmatpush.xpose.msra.mxu0 0.0
    %509 = vmatpush.xpose.msra.mxu0 0.0
    %510 = vmatpush.xpose.msra.mxu0 0.0
    %511 = vmatpush.xpose.msra.mxu0 0.0
    %512 = vmatpush.xpose.msra.mxu0 0.0
    %513 = vmatpush.xpose.msra.mxu0 0.0
    %514 = vmatpush.xpose.msra.mxu0 0.0
    %515 = vmatpush.xpose.msra.mxu0 0.0
    %516 = vmatpush.xpose.msra.mxu0 0.0
    %517 = vmatpush.xpose.msra.mxu0 0.0
    %518 = vmatpush.xpose.msra.mxu0 0.0
    %519 = vmatpush.xpose.msra.mxu0 0.0
    %520 = vmatpush.xpose.msra.mxu0 0.0
    %521 = vmatpush.xpose.msra.mxu0 0.0
    %522 = vmatpush.xpose.msra.mxu0 0.0
    %523 = vmatpush.xpose.msra.mxu0 %v506
    %524 = vmatmul.f32.gmra.mxu0 %v504
    %v525 = vpop.f32.mrf.mxu0
    %v526 = vadd.f32 0.0, %v525
    %527 = vdwg.mxu0
    %v528 = vsel %vm209, %v498, -inf
    %529 = vmax.xlane.f32.xlu0 %v528
    %v530 = vpop.xlane.xlu0 %529
    %v531 = vsel %vm209, %v526, -inf
    %532 = vmax.xlane.f32.xlu0 %v531
    %v533 = vpop.xlane.xlu0 %532
    %v534 = vsub.f32 %v498, %v530
    %v535 = vsub.f32 %v526, %v533
    %v536 = vmul.f32 %v534, 1.442695
    %v537 = vpow.pop %v536
    %v538 = vmul.f32 %v535, 1.442695
    %v539 = vpow.pop %v538
    %v540 = vsel %vm209, %v537, 0.0
    %541 = vadd.xlane.f32.xlu0 %v540
    %v542 = vpop.xlane.xlu0 %541
    %v543 = vsel %vm209, %v539, 0.0
    %544 = vadd.xlane.f32.xlu0 %v543
    %v545 = vpop.xlane.xlu0 %544
    %v546 = vrcp.pop %v542
    %v547 = vrcp.pop %v545
    %v548 = vmul.f32 %v537, %v546
    %v549 = vmul.f32 %v539, %v547
    %550 = vrot.lane.b32.xlu0 %v145, 96
    %v551 = vpop.permute.xlu0 %550
    %v554 = vsel %vm209, %v548, 0
    %556 = vmatpush.msra.mxu0 0.0
    %557 = vmatpush.msra.mxu0 0.0
    %558 = vmatpush.msra.mxu0 0.0
    %559 = vmatpush.msra.mxu0 0.0
    %560 = vmatpush.msra.mxu0 0.0
    %561 = vmatpush.msra.mxu0 0.0
    %562 = vmatpush.msra.mxu0 0.0
    %563 = vmatpush.msra.mxu0 0.0
    %564 = vmatpush.msra.mxu0 0.0
    %565 = vmatpush.msra.mxu0 0.0
    %566 = vmatpush.msra.mxu0 0.0
    %567 = vmatpush.msra.mxu0 0.0
    %568 = vmatpush.msra.mxu0 0.0
    %569 = vmatpush.msra.mxu0 0.0
    %570 = vmatpush.msra.mxu0 0.0
    %571 = vmatpush.msra.mxu0 %v551
    %572 = vmatmul.f32.gmra.mxu0 %v554
    %v573 = vpop.f32.mrf.mxu0
    %v574 = vadd.f32 0.0, %v573
    %575 = vdwg.mxu0
    %576 = vrot.lane.b32.xlu0 %v148, 96
    %v577 = vpop.permute.xlu0 %576
    %v580 = vsel %vm209, %v549, 0
    %582 = vmatpush.msra.mxu0 0.0
    %583 = vmatpush.msra.mxu0 0.0
    %584 = vmatpush.msra.mxu0 0.0
    %585 = vmatpush.msra.mxu0 0.0
    %586 = vmatpush.msra.mxu0 0.0
    %587 = vmatpush.msra.mxu0 0.0
    %588 = vmatpush.msra.mxu0 0.0
    %589 = vmatpush.msra.mxu0 0.0
    %590 = vmatpush.msra.mxu0 0.0
    %591 = vmatpush.msra.mxu0 0.0
    %592 = vmatpush.msra.mxu0 0.0
    %593 = vmatpush.msra.mxu0 0.0
    %594 = vmatpush.msra.mxu0 0.0
    %595 = vmatpush.msra.mxu0 0.0
    %596 = vmatpush.msra.mxu0 0.0
    %597 = vmatpush.msra.mxu0 %v577
    %598 = vmatmul.f32.gmra.mxu0 %v580
    %v599 = vpop.f32.mrf.mxu0
    %v600 = vadd.f32 0.0, %v599
    %601 = vdwg.mxu0
    %v602 = vld [vmem:[%s4 + $0x20] sm:$0xff]
    %v603 = vld [vmem:[%s4 + $0x28] sm:$0xff]
    %v605 = vsel %vm155, %v574, 0
    %v608 = vsel %vm155, %v600, 0
    %610 = vmatpush.msra.mxu0 0.0
    %611 = vmatpush.msra.mxu0 0.0
    %612 = vmatpush.msra.mxu0 0.0
    %613 = vmatpush.msra.mxu0 0.0
    %614 = vmatpush.msra.mxu0 0.0
    %615 = vmatpush.msra.mxu0 0.0
    %616 = vmatpush.msra.mxu0 0.0
    %617 = vmatpush.msra.mxu0 0.0
    %618 = vmatpush.msra.mxu0 0.0
    %619 = vmatpush.msra.mxu0 0.0
    %620 = vmatpush.msra.mxu0 0.0
    %621 = vmatpush.msra.mxu0 0.0
    %622 = vmatpush.msra.mxu0 0.0
    %623 = vmatpush.msra.mxu0 0.0
    %624 = vmatpush.msra.mxu0 %v603
    %625 = vmatpush.msra.mxu0 %v602
    %626 = vmatmul.f32.gmra.mxu0 %v605
    %v627 = vpop.f32.mrf.mxu0
    %v628 = vadd.f32 0.0, %v627
    %629 = vmatmul.f32.gmra.mxu0 %v608
    %v630 = vpop.f32.mrf.mxu0
    %v631 = vadd.f32 0.0, %v630
    %632 = vdwg.mxu0
    %v633 = vadd.f32 %v467, %v628
    %v634 = vadd.f32 %v470, %v631
    %635 = vrot.lane.b32.xlu0 %v150, 80
    %v636 = vpop.permute.xlu0 %635
    %637 = vrot.lane.b32.xlu0 %v122, 16
    %v638 = vpop.permute.xlu0 %637
    %v639 = vsel %vm155, %v636, 0
    %v641 = vsel %vm155, %v638, 0
    %643 = vmatpush.xpose.msra.mxu0 0.0
    %644 = vmatpush.xpose.msra.mxu0 0.0
    %645 = vmatpush.xpose.msra.mxu0 0.0
    %646 = vmatpush.xpose.msra.mxu0 0.0
    %647 = vmatpush.xpose.msra.mxu0 0.0
    %648 = vmatpush.xpose.msra.mxu0 0.0
    %649 = vmatpush.xpose.msra.mxu0 0.0
    %650 = vmatpush.xpose.msra.mxu0 0.0
    %651 = vmatpush.xpose.msra.mxu0 0.0
    %652 = vmatpush.xpose.msra.mxu0 0.0
    %653 = vmatpush.xpose.msra.mxu0 0.0
    %654 = vmatpush.xpose.msra.mxu0 0.0
    %655 = vmatpush.xpose.msra.mxu0 0.0
    %656 = vmatpush.xpose.msra.mxu0 0.0
    %657 = vmatpush.xpose.msra.mxu0 0.0
    %658 = vmatpush.xpose.msra.mxu0 %v641
    %659 = vmatmul.f32.gmra.mxu0 %v639
    %v660 = vpop.f32.mrf.mxu0
    %v661 = vadd.f32 0.0, %v660
    %662 = vdwg.mxu0
    %663 = vrot.lane.b32.xlu0 %v151, 80
    %v664 = vpop.permute.xlu0 %663
    %665 = vrot.lane.b32.xlu0 %v125, 16
    %v666 = vpop.permute.xlu0 %665
    %v667 = vsel %vm155, %v664, 0
    %v669 = vsel %vm155, %v666, 0
    %671 = vmatpush.xpose.msra.mxu0 0.0
    %672 = vmatpush.xpose.msra.mxu0 0.0
    %673 = vmatpush.xpose.msra.mxu0 0.0
    %674 = vmatpush.xpose.msra.mxu0 0.0
    %675 = vmatpush.xpose.msra.mxu0 0.0
    %676 = vmatpush.xpose.msra.mxu0 0.0
    %677 = vmatpush.xpose.msra.mxu0 0.0
    %678 = vmatpush.xpose.msra.mxu0 0.0
    %679 = vmatpush.xpose.msra.mxu0 0.0
    %680 = vmatpush.xpose.msra.mxu0 0.0
    %681 = vmatpush.xpose.msra.mxu0 0.0
    %682 = vmatpush.xpose.msra.mxu0 0.0
    %683 = vmatpush.xpose.msra.mxu0 0.0
    %684 = vmatpush.xpose.msra.mxu0 0.0
    %685 = vmatpush.xpose.msra.mxu0 0.0
    %686 = vmatpush.xpose.msra.mxu0 %v669
    %687 = vmatmul.f32.gmra.mxu0 %v667
    %v688 = vpop.f32.mrf.mxu0
    %v689 = vadd.f32 0.0, %v688
    %690 = vdwg.mxu0
    %v691 = vsel %vm209, %v661, -inf
    %692 = vmax.xlane.f32.xlu0 %v691
    %v693 = vpop.xlane.xlu0 %692
    %v694 = vsel %vm209, %v689, -inf
    %695 = vmax.xlane.f32.xlu0 %v694
    %v696 = vpop.xlane.xlu0 %695
    %v697 = vsub.f32 %v661, %v693
    %v698 = vsub.f32 %v689, %v696
    %v699 = vmul.f32 %v697, 1.442695
    %v700 = vpow.pop %v699
    %v701 = vmul.f32 %v698, 1.442695
    %v702 = vpow.pop %v701
    %v703 = vsel %vm209, %v700, 0.0
    %704 = vadd.xlane.f32.xlu0 %v703
    %v705 = vpop.xlane.xlu0 %704
    %v706 = vsel %vm209, %v702, 0.0
    %707 = vadd.xlane.f32.xlu0 %v706
    %v708 = vpop.xlane.xlu0 %707
    %v709 = vrcp.pop %v705
    %v710 = vrcp.pop %v708
    %v711 = vmul.f32 %v700, %v709
    %v712 = vmul.f32 %v702, %v710
    %713 = vrot.lane.b32.xlu0 %v145, 80
    %v714 = vpop.permute.xlu0 %713
    %v717 = vsel %vm209, %v711, 0
    %719 = vmatpush.msra.mxu0 0.0
    %720 = vmatpush.msra.mxu0 0.0
    %721 = vmatpush.msra.mxu0 0.0
    %722 = vmatpush.msra.mxu0 0.0
    %723 = vmatpush.msra.mxu0 0.0
    %724 = vmatpush.msra.mxu0 0.0
    %725 = vmatpush.msra.mxu0 0.0
    %726 = vmatpush.msra.mxu0 0.0
    %727 = vmatpush.msra.mxu0 0.0
    %728 = vmatpush.msra.mxu0 0.0
    %729 = vmatpush.msra.mxu0 0.0
    %730 = vmatpush.msra.mxu0 0.0
    %731 = vmatpush.msra.mxu0 0.0
    %732 = vmatpush.msra.mxu0 0.0
    %733 = vmatpush.msra.mxu0 0.0
    %734 = vmatpush.msra.mxu0 %v714
    %735 = vmatmul.f32.gmra.mxu0 %v717
    %v736 = vpop.f32.mrf.mxu0
    %v737 = vadd.f32 0.0, %v736
    %738 = vdwg.mxu0
    %739 = vrot.lane.b32.xlu0 %v148, 80
    %v740 = vpop.permute.xlu0 %739
    %v743 = vsel %vm209, %v712, 0
    %745 = vmatpush.msra.mxu0 0.0
    %746 = vmatpush.msra.mxu0 0.0
    %747 = vmatpush.msra.mxu0 0.0
    %748 = vmatpush.msra.mxu0 0.0
    %749 = vmatpush.msra.mxu0 0.0
    %750 = vmatpush.msra.mxu0 0.0
    %751 = vmatpush.msra.mxu0 0.0
    %752 = vmatpush.msra.mxu0 0.0
    %753 = vmatpush.msra.mxu0 0.0
    %754 = vmatpush.msra.mxu0 0.0
    %755 = vmatpush.msra.mxu0 0.0
    %756 = vmatpush.msra.mxu0 0.0
    %757 = vmatpush.msra.mxu0 0.0
    %758 = vmatpush.msra.mxu0 0.0
    %759 = vmatpush.msra.mxu0 0.0
    %760 = vmatpush.msra.mxu0 %v740
    %761 = vmatmul.f32.gmra.mxu0 %v743
    %v762 = vpop.f32.mrf.mxu0
    %v763 = vadd.f32 0.0, %v762
    %764 = vdwg.mxu0
    %v765 = vld [vmem:[%s4 + $0x30] sm:$0xff]
    %v766 = vld [vmem:[%s4 + $0x38] sm:$0xff]
    %v768 = vsel %vm155, %v737, 0
    %v771 = vsel %vm155, %v763, 0
    %773 = vmatpush.msra.mxu0 0.0
    %774 = vmatpush.msra.mxu0 0.0
    %775 = vmatpush.msra.mxu0 0.0
    %776 = vmatpush.msra.mxu0 0.0
    %777 = vmatpush.msra.mxu0 0.0
    %778 = vmatpush.msra.mxu0 0.0
    %779 = vmatpush.msra.mxu0 0.0
    %780 = vmatpush.msra.mxu0 0.0
    %781 = vmatpush.msra.mxu0 0.0
    %782 = vmatpush.msra.mxu0 0.0
    %783 = vmatpush.msra.mxu0 0.0
    %784 = vmatpush.msra.mxu0 0.0
    %785 = vmatpush.msra.mxu0 0.0
    %786 = vmatpush.msra.mxu0 0.0
    %787 = vmatpush.msra.mxu0 %v766
    %788 = vmatpush.msra.mxu0 %v765
    %789 = vmatmul.f32.gmra.mxu0 %v768
    %v790 = vpop.f32.mrf.mxu0
    %v791 = vadd.f32 0.0, %v790
    %792 = vmatmul.f32.gmra.mxu0 %v771
    %v793 = vpop.f32.mrf.mxu0
    %v794 = vadd.f32 0.0, %v793
    %795 = vdwg.mxu0
    %v796 = vadd.f32 %v633, %v791
    %v797 = vadd.f32 %v634, %v794
    %v798 = vld [vmem:[%s5] sm:$0x1]
    %v800 = vperm.slane %v798, 0
    %v802 = vadd.f32 %v796, %v800
    %v803 = vadd.f32 %v797, %v800
    %804 = vst.msk [vmem:[#allocation2] sm:$0xff] %vm26, %v802
    %805 = vst.msk [vmem:[#allocation2 + $0x8] sm:$0xff] %vm26, %v803
    // Predicated region
    $region26: #{tpu_custom_call.1} parent=1 // pred_check
      _
    $region27: #{tpu_custom_call.1} parent=1 // pred_check_branch
      %807 = sbr.rel (0) target = $region29
    $region28: #{tpu_custom_call.1} parent=1 // pred_region
      %809 = vsyncadd [#allocation3], 0
      %s810 = sshll.u32 [#allocation2], 4
      %s811 = int_to_ptr.vmem [resolvable:$true] %s810
      %s812 = sshll.u32 %s6, 4
      %s813 = int_to_ptr.hbm [resolvable:$true] %s812
      %818 = dma.vmem_to_hbm [thread:$0]  %s811, 256, %s813, [#allocation3], 128, 128, 8
    $region29: #{tpu_custom_call.1} parent=1 // pred_fallthru
      _
    // Predicated region
    $region30: #{tpu_custom_call.1} parent=1 // pred_check
      _
    $region31: #{tpu_custom_call.1} parent=1 // pred_check_branch
      %820 = sbr.rel (0) target = $region33
    $region32: #{tpu_custom_call.1} parent=1 // pred_region
      %822 = dma.done [#allocation3], 256
    $region33: #{tpu_custom_call.1} parent=1 // pred_fallthru
      _
    %823 = vsyncpa [#allocation3], 1

</llo_original>
